<compile_context>
chip_gen: v5e
topology: v5e:2x2
jax: 0.10.0
libtpu: 0.0.40
codegen_flags: <defaults>
</compile_context>

<pallas_src>
import jax
import jax.numpy as jnp
from jax.experimental import pallas as pl
from jax.experimental.pallas import tpu as pltpu

PAD = 14            # width of the torch.zeros(x1.size(0), 14) block
_LANE = 128
_SMALL_OUT_ELEMS = 1 << 16   # below this, let XLA fuse (launch overhead dominates)


def _sublane_multiple(dtype) -> int:
    itemsize = jnp.dtype(dtype).itemsize
    return {4: 8, 2: 16, 1: 32}.get(itemsize, 8)


def _cat_kernel(x_ref, o_ref):
    # x_ref: (TB, D1) in VMEM, o_ref: (TB, 2*D1 + PAD) in VMEM.
    x = x_ref[...]
    tb, d1 = x.shape
    out_cols = o_ref.shape[-1]
    pad = out_cols - 2 * d1
    zeros = jnp.zeros((tb, pad), dtype=x.dtype)
    if d1 % _LANE == 0:
        # Lane-aligned columns: direct slice stores, no cross-lane shuffles.
        o_ref[:, :d1] = x
        o_ref[:, d1:2 * d1] = x
        o_ref[:, 2 * d1:] = zeros
    else:
        # Narrow / lane-misaligned columns (e.g. D1=6): assemble the whole
        # row in vregs and issue one store instead of three masked ones.
        o_ref[...] = jnp.concatenate([x, x, zeros], axis=1)


def _pick_block_rows(b: int, d1: int, out_cols: int, dtype) -> int:
    """Pick a batch tile using lane-PADDED block footprints."""
    itemsize = jnp.dtype(dtype).itemsize
    sub = _sublane_multiple(dtype)
    if b <= sub:
        return b                                   # full array = one legal block

    in_w = pl.cdiv(d1, _LANE) * _LANE              # lane-padded widths
    out_w = pl.cdiv(out_cols, _LANE) * _LANE
    bytes_per_row = (in_w + out_w) * itemsize

    # ~6 MiB per (in+out) block pair -> ~12 MiB double-buffered: headroom on
    # every generation (v5e 16 MiB default scoped, v7x 64 MiB physical).
    budget = 6 * 1024 * 1024
    tb = budget // max(bytes_per_row, 1)
    # Keep the grid multi-step (pipelining + both v7x TensorCores busy).
    tb = min(tb, 2048, pl.cdiv(b, 4))
    tb = max(sub, (tb // sub) * sub)               # dtype-legal sublane multiple
    if tb >= b:
        return b
    return tb


def _pallas_cat(x1: jax.Array, *, block_rows: int | None = None) -> jax.Array:
    b, d1 = x1.shape
    out_cols = 2 * d1 + PAD
    tb = block_rows if block_rows is not None else _pick_block_rows(
        b, d1, out_cols, x1.dtype)

    grid = (pl.cdiv(b, tb),)
    return pl.pallas_call(
        _cat_kernel,
        out_shape=jax.ShapeDtypeStruct((b, out_cols), x1.dtype),
        grid=grid,
        # Last dims equal the full array widths (d1 / out_cols), so the
        # (8,128) constraint is satisfied even for D1=6 / 26 output cols;
        # tb is either == b or a multiple of the dtype sublane tile.
        in_specs=[pl.BlockSpec((tb, d1), lambda i: (i, 0))],
        out_specs=pl.BlockSpec((tb, out_cols), lambda i: (i, 0)),
        compiler_params=pltpu.CompilerParams(
            dimension_semantics=("parallel",),
            vmem_limit_bytes=32 * 1024 * 1024,
        ),
    )(x1)


def cat_mm_forward(x1: jax.Array, *, block_rows: int | None = None,
                   force_pallas: bool = False) -> jax.Array:
    """Forward pass of the module: [x1 | x1 | zeros(B, 14)]."""
    b, d1 = x1.shape
    out_elems = b * (2 * d1 + PAD)
    if not force_pallas and out_elems < _SMALL_OUT_ELEMS:
        # Tiny tensors: pallas_call fixed cost dwarfs <1 KiB of data movement;
        # XLA fuses this concat into neighbors for free.
        return _reference(x1)
    return _pallas_cat(x1, block_rows=block_rows)


def _reference(x1: jax.Array) -> jax.Array:
    x2 = jnp.zeros((x1.shape[0], PAD), dtype=x1.dtype)
    x3 = jnp.concatenate([x1, x2], axis=1)
    return jnp.concatenate([x1, x3], axis=1)


if __name__ == "__main__":
    key = jax.random.PRNGKey(0)

    # 1) The module's own shape (2, 6) -> (2, 26), forced through the Pallas
    #    kernel so the kernel itself is exercised at the spec shape.
    x1 = jax.random.normal(key, (2, 6), dtype=jnp.float32)
    out = cat_mm_forward(x1, force_pallas=True)
    jax.block_until_ready(out)
    assert out.shape == (2, 26), out.shape
    assert jnp.allclose(out, _reference(x1)), "mismatch vs reference (2,6)"

    # 2) Multi-step grid with a partial final tile.
    x_mid = jax.random.normal(jax.random.PRNGKey(1), (20, 6), dtype=jnp.float32)
    out_mid = cat_mm_forward(x_mid, block_rows=8, force_pallas=True)  # grid of 3
    jax.block_until_ready(out_mid)
    assert out_mid.shape == (20, 26), out_mid.shape
    assert jnp.allclose(out_mid, _reference(x_mid)), "mismatch vs reference (20,6)"

    # 3) Larger batch through the default heuristic (tb=1024 -> grid of 4).
    x_big = jax.random.normal(jax.random.PRNGKey(2), (4096, 6), dtype=jnp.float32)
    out_big = cat_mm_forward(x_big)
    jax.block_until_ready(out_big)
    assert out_big.shape == (4096, 26), out_big.shape
    assert jnp.allclose(out_big, _reference(x_big)), "mismatch vs reference (4096,6)"

    print("KERNEL_OK")
</pallas_src>

<mosaic_0001>
module attributes {stable_mosaic.version = 11 : i64} {
  func.func @_cat_kernel(%arg0: i32, %arg1: memref<2x6xf32, #tpu.memory_space<vmem>>, %arg2: memref<2x26xf32, #tpu.memory_space<vmem>>) attributes {dimension_semantics = [#tpu.dimension_semantics<parallel>], iteration_bounds = array<i64: 1>, scalar_prefetch = 0 : i64, scratch_operands = 0 : i64, tpu.core_type = #tpu.core_type<tc>, window_params = [{transform_indices = @transform_0, window_bounds = array<i64: 2, 6>}, {transform_indices = @transform_1, window_bounds = array<i64: 2, 26>}]} {
    %c0 = arith.constant 0 : index
    %c0_0 = arith.constant 0 : index
    %0 = vector.load %arg1[%c0, %c0_0] : memref<2x6xf32, #tpu.memory_space<vmem>>, vector<2x6xf32>
    %cst = arith.constant 0.000000e+00 : f32
    %1 = vector.broadcast %cst : f32 to vector<2x14xf32>
    %2 = tpu.concatenate %0, %0, %1 in 1 : vector<2x6xf32>, vector<2x6xf32>, vector<2x14xf32> -> vector<2x26xf32>
    %c0_1 = arith.constant 0 : index
    %c0_2 = arith.constant 0 : index
    %3 = vector.load %arg2[%c0_1, %c0_2] : memref<2x26xf32, #tpu.memory_space<vmem>>, vector<2x26xf32>
    tpu.vector_store %arg2[%c0_1, %c0_2], %2 {strides = array<i32>} : memref<2x26xf32, #tpu.memory_space<vmem>>, vector<2x26xf32>,
    return
  }
  func.func @transform_0(%arg0: i32) -> (i32, i32) {
    %c0_i32 = arith.constant 0 : i32
    %c0_i32_0 = arith.constant 0 : i32
    return %arg0, %c0_i32 : i32, i32
  }
  func.func @transform_1(%arg0: i32) -> (i32, i32) {
    %c0_i32 = arith.constant 0 : i32
    %c0_i32_0 = arith.constant 0 : i32
    return %arg0, %c0_i32 : i32, i32
  }
}

</mosaic_0001>

<llo_original>
// kernel: tpu_custom_call.1
$region0: #{tpu_custom_call.1}
  #allocation0 [shape = 'u32[]', space=smem, size = 0x4, offset = 0x4, fixed_abs, tag = 'smem constant byte address 0x4 - core index']
  #allocation1 [shape = 'u32[72,128]{1,0:T(1,128)}', space=vmem, size = 0x9000, scoped, tag = 'internal scratch']
  %s0 = inlined_call_operand.hbm [shape: f32[2,6], index: 0, kind: input, shape index: {}]
  %s1 = inlined_call_operand.hbm [shape: f32[2,26], index: 1, kind: output, shape index: {}]
  %s2 = sld [smem:[#allocation0]]
  $region18: #{tpu_custom_call.1} parent=0
    _
  %s4 = ssub.s32 1, %s2
  %s5 = scalar_select 0, %s4, %s2
  $region1: #{tpu_custom_call.1} parent=0
    #allocation2 [shape = 'u8[1024]{0}', space=vmem, size = 0x400, scoped, tag = 'input window, operand 0, single buffered']
    #allocation3 [shape = 's32[1]{0}', space=sflag, size = 0x4, scoped, tag = 'scoped memory for tpu_custom_call.1']
    #allocation4 [shape = 's32[1]{0}', space=sflag, size = 0x4, scoped, tag = 'scoped memory for tpu_custom_call.1']
    #allocation5 [shape = 'u8[1024]{0}', space=vmem, size = 0x400, scoped, tag = 'output window, operand 0, single buffered']
    %6 = vsyncpa [#allocation3], 0
    %7 = vsyncpa [#allocation4], 0
    // Predicated region
    $region2: #{tpu_custom_call.1} parent=1 // pred_check
      _
    $region3: #{tpu_custom_call.1} parent=1 // pred_check_branch
      %9 = sbr.rel (0) target = $region5
    $region4: #{tpu_custom_call.1} parent=1 // pred_region
      %11 = vsyncadd [#allocation3], 0
      %s13 = sshll.u32 %s0, 4
      %s14 = int_to_ptr.hbm [resolvable:$true] %s13
      %s15 = sshll.u32 [#allocation2], 4
      %s16 = int_to_ptr.vmem [resolvable:$true] %s15
      %18 = dma.hbm_to_vmem [thread:$0]  %s14, 32, %s16, [#allocation3]
    $region5: #{tpu_custom_call.1} parent=1 // pred_fallthru
      _
    // Predicated region
    $region6: #{tpu_custom_call.1} parent=1 // pred_check
      _
    $region7: #{tpu_custom_call.1} parent=1 // pred_check_branch
      %20 = sbr.rel (0) target = $region9
    $region8: #{tpu_custom_call.1} parent=1 // pred_region
      %22 = dma.done [#allocation3], 32
    $region9: #{tpu_custom_call.1} parent=1 // pred_fallthru
      _
    %v23 = vld [vmem:[#allocation2] sm:$0x3]
    %25 = vrot.lane.b32.xlu0 %v23, 6
    %v26 = vpop.permute.xlu0 %25
    %vm28 = vcmask 48128
    %v29 = vsel %vm28, %v23, %v26
    %vm30 = vcmask 97280
    %v31 = vsel %vm30, %v29, 0.0
    %vm32 = vcmask 205824
    %33 = vst.msk [vmem:[#allocation5] sm:$0x3] %vm32, %v31
    // Predicated region
    $region10: #{tpu_custom_call.1} parent=1 // pred_check
      _
    $region11: #{tpu_custom_call.1} parent=1 // pred_check_branch
      %35 = sbr.rel (0) target = $region13
    $region12: #{tpu_custom_call.1} parent=1 // pred_region
      %37 = vsyncadd [#allocation4], 0
      %s39 = sshll.u32 [#allocation5], 4
      %s40 = int_to_ptr.vmem [resolvable:$true] %s39
      %s41 = sshll.u32 %s1, 4
      %s42 = int_to_ptr.hbm [resolvable:$true] %s41
      %44 = dma.vmem_to_hbm [thread:$0]  %s40, 32, %s42, [#allocation4]
    $region13: #{tpu_custom_call.1} parent=1 // pred_fallthru
      _
    // Predicated region
    $region14: #{tpu_custom_call.1} parent=1 // pred_check
      _
    $region15: #{tpu_custom_call.1} parent=1 // pred_check_branch
      %46 = sbr.rel (0) target = $region17
    $region16: #{tpu_custom_call.1} parent=1 // pred_region
      %48 = dma.done [#allocation4], 32
    $region17: #{tpu_custom_call.1} parent=1 // pred_fallthru
      _
    %49 = vsyncpa [#allocation3], 1
    %50 = vsyncpa [#allocation4], 1

</llo_original>
